<compile_context>
chip_gen: v5e
topology: v5e:2x2
jax: 0.10.0
libtpu: 0.0.40
codegen_flags: <defaults>
</compile_context>

<pallas_src>
import functools

import jax
import jax.numpy as jnp
from jax.experimental import pallas as pl
from jax.experimental.pallas import tpu as pltpu


def _round_up(x: int, m: int) -> int:
    return (x + m - 1) // m * m


def _vmem_capacity_bytes() -> int:
    try:
        info = pltpu.get_tpu_info()
        cap = getattr(info, "vmem_capacity_bytes", None)
        if cap:
            return int(cap)
    except Exception:
        pass
    return 64 * 1024 * 1024  # conservative default (v7x per-TensorCore VMEM)


def _cls_mdca_kernel(x_ref, w_ref, b_ref, t_ref, logits_ref, loss_ref, *,
                     beta: float, gamma: float, n_b: int, n_k: int):
    k = pl.program_id(0)

    # Seed the resident output accumulator with the broadcast bias (k == 0 only).
    @pl.when(k == 0)
    def _():
        logits_ref[...] = jnp.broadcast_to(b_ref[...], logits_ref.shape)

    # Streamed classifier matmul on the MXU, f32 accumulation straight into the
    # (resident) logits output buffer.
    logits_ref[...] += jnp.dot(x_ref[...], w_ref[...],
                               preferred_element_type=jnp.float32)

    # Epilogue on the last D-chunk: masked log-softmax + focal + MDCA.
    @pl.when(k == pl.num_programs(0) - 1)
    def _():
        logits = logits_ref[...]                                  # (Bp, Kp) f32
        Bp, Kp = logits.shape

        col_ids = jax.lax.broadcasted_iota(jnp.int32, (Bp, Kp), 1)
        col_valid = col_ids < n_k                                 # mask padded classes
        row_ids = jax.lax.broadcasted_iota(jnp.int32, (Bp, 1), 0)
        row_valid = (row_ids < n_b).astype(jnp.float32)           # mask padded rows

        # log_softmax over valid classes only (single exp pass).
        neg_big = jnp.float32(-1e30)
        m = jnp.max(jnp.where(col_valid, logits, neg_big), axis=1, keepdims=True)
        shifted = logits - m
        e = jnp.where(col_valid, jnp.exp(shifted), 0.0)
        sum_e = jnp.sum(e, axis=1, keepdims=True)
        log_probs = shifted - jnp.log(sum_e)
        probs = e * pl.reciprocal(sum_e, approx=False)            # reuse e, no 2nd exp

        # one-hot targets (padded rows carry target = -1 -> all-zero row).
        one_hot = jnp.where(col_ids == t_ref[...], 1.0, 0.0)      # (Bp, Kp) f32

        # ---- FocalLoss(gamma) ----
        logpt = jnp.sum(log_probs * one_hot, axis=1, keepdims=True)   # (Bp, 1)
        pt = jnp.exp(logpt)
        if gamma == 0.0:
            weight = jnp.ones_like(pt)
        elif gamma == 1.0:
            weight = 1.0 - pt
        else:
            # clamp avoids NaN from (1 - pt) < 0 by a few ULPs with fractional gamma
            weight = jnp.power(jnp.maximum(1.0 - pt, 0.0), jnp.float32(gamma))
        focal = -1.0 * weight * logpt * row_valid
        loss_cls = jnp.sum(focal) / jnp.float32(n_b)

        # ---- MDCA ----
        probs_b = probs * row_valid
        avg_conf = jnp.sum(probs_b, axis=0, keepdims=True) / jnp.float32(n_b)
        avg_count = jnp.sum(one_hot, axis=0, keepdims=True) / jnp.float32(n_b)
        loss_cal = jnp.sum(jnp.abs(avg_conf - avg_count)) / jnp.float32(n_k)

        loss = loss_cls + jnp.float32(beta) * loss_cal
        loss_ref[...] = jnp.broadcast_to(jnp.reshape(loss, (1, 1)), loss_ref.shape)


def classification_and_mdca(x, targets, w, b, *, beta=1.0, gamma=1.0,
                            compute_dtype=jnp.float32, block_k=None):
    """Training-mode forward of ClassficationAndMDCA. Returns (logits, loss).

    logits = flatten(x) @ w + b   (linear classifier head)
    loss   = FocalLoss(gamma)(logits, targets) + beta * MDCA(logits, targets)
    """
    B = x.shape[0]
    x_flat = jnp.reshape(x, (B, -1))                       # NCHW -> (B, D)
    D = x_flat.shape[1]
    K = w.shape[1]

    itemsize = jnp.dtype(compute_dtype).itemsize
    row_mult = max(8, 32 // itemsize)                      # f32 -> 8, bf16 -> 16
    B_pad = _round_up(B, row_mult)
    K_pad = _round_up(K, 128)
    D_pad = _round_up(D, 128)                              # pad D to lanes only

    cap = _vmem_capacity_bytes()

    # ---- pick D-chunk size tk: largest 128-multiple divisor of D_pad that fits
    #      the generation-aware VMEM budget (small problems -> single grid step).
    n128 = D_pad // 128
    per_unit = 2 * (B_pad * 128 + 128 * K_pad) * itemsize  # dbl-buffered streams / 128 cols
    resident = (2 * B_pad * K_pad * 4                      # resident logits output bufs
                + 8 * B_pad * K_pad * 4                    # epilogue f32 temporaries
                + 4 * (K_pad * 4 + B_pad * 4) + 2 * 128 * 4)
    budget = max(int(cap * 0.6) - resident, per_unit)
    units = max(1, budget // per_unit)
    if block_k is not None:
        units = min(units, max(1, int(block_k) // 128))
    units = min(units, n128)
    while n128 % units != 0:                               # largest divisor of n128
        units -= 1
    tk = units * 128
    nk = n128 // units

    # ---- pad / cast only when actually required (no redundant HBM passes).
    x_c = x_flat if x_flat.dtype == compute_dtype else x_flat.astype(compute_dtype)
    if (B_pad, D_pad) != (B, D):
        x_c = jnp.pad(x_c, ((0, B_pad - B), (0, D_pad - D)))
    w_c = w if w.dtype == compute_dtype else w.astype(compute_dtype)
    if (D_pad, K_pad) != (D, K):
        w_c = jnp.pad(w_c, ((0, D_pad - D), (0, K_pad - K)))
    b_c = jnp.reshape(b, (1, K)).astype(jnp.float32)
    if K_pad != K:
        b_c = jnp.pad(b_c, ((0, 0), (0, K_pad - K)))
    t_c = jnp.reshape(targets.astype(jnp.int32), (B, 1))
    if B_pad != B:
        t_c = jnp.pad(t_c, ((0, B_pad - B), (0, 0)), constant_values=-1)

    # ---- VMEM accounting (includes the epilogue's full-tile temporaries).
    est = (2 * (B_pad * tk + tk * K_pad) * itemsize        # double-buffered x/w streams
           + 2 * (K_pad * 4 + B_pad * 4)                   # bias / targets buffers
           + 2 * (B_pad * K_pad * 4 + 128 * 4)             # outputs (logits acc + loss)
           + 8 * B_pad * K_pad * 4)                        # epilogue f32 temporaries
    vmem_limit = int(min(max(est + (4 << 20), 16 << 20), cap * 3 // 4))
    vmem_limit = max(vmem_limit, est + (1 << 20))

    kernel = functools.partial(_cls_mdca_kernel, beta=float(beta),
                               gamma=float(gamma), n_b=B, n_k=K)

    logits_p, loss_p = pl.pallas_call(
        kernel,
        out_shape=(
            jax.ShapeDtypeStruct((B_pad, K_pad), jnp.float32),
            jax.ShapeDtypeStruct((1, 128), jnp.float32),
        ),
        grid_spec=pltpu.PrefetchScalarGridSpec(
            num_scalar_prefetch=0,
            grid=(nk,),
            in_specs=[
                pl.BlockSpec((B_pad, tk), lambda k: (0, k)),
                pl.BlockSpec((tk, K_pad), lambda k: (k, 0)),
                pl.BlockSpec((1, K_pad), lambda k: (0, 0)),
                pl.BlockSpec((B_pad, 1), lambda k: (0, 0)),
            ],
            out_specs=[
                pl.BlockSpec((B_pad, K_pad), lambda k: (0, 0)),
                pl.BlockSpec((1, 128), lambda k: (0, 0)),
            ],
        ),
        compiler_params=pltpu.CompilerParams(
            dimension_semantics=("arbitrary",),
            vmem_limit_bytes=vmem_limit),
    )(x_c, w_c, b_c, t_c)

    return logits_p[:B, :K], loss_p[0, 0]


def _reference(x, targets, w, b, beta=1.0, gamma=1.0):
    """Plain-JAX reference replicating the PyTorch module (f32)."""
    B = x.shape[0]
    x_flat = jnp.reshape(x, (B, -1)).astype(jnp.float32)
    logits = x_flat @ w.astype(jnp.float32) + jnp.reshape(b, (1, -1)).astype(jnp.float32)
    log_probs = jax.nn.log_softmax(logits, axis=1)
    probs = jax.nn.softmax(logits, axis=1)
    logpt = jnp.take_along_axis(
        log_probs, targets[:, None].astype(jnp.int32), axis=1)[:, 0]
    pt = jnp.exp(logpt)
    loss_cls = jnp.mean(-1.0 * (1.0 - pt) ** gamma * logpt)
    K = logits.shape[1]
    one_hot = jax.nn.one_hot(targets, K, dtype=jnp.float32)
    loss_cal = jnp.mean(jnp.abs(jnp.mean(probs, axis=0) - jnp.mean(one_hot, axis=0)))
    return logits, loss_cls + beta * loss_cal


if __name__ == "__main__":
    # Small shapes consistent with the module: NCHW image batch + int targets;
    # the classifier is a linear head over the flattened input.
    B, C, H, W = 2, 4, 16, 16
    K = 10
    D = C * H * W

    key = jax.random.PRNGKey(0)
    kx, kw, kb, kt = jax.random.split(key, 4)
    x = jax.random.normal(kx, (B, C, H, W), dtype=jnp.float32)
    targets = jax.random.randint(kt, (B,), 0, K, dtype=jnp.int32)
    w = jax.random.normal(kw, (D, K), dtype=jnp.float32) * 0.02
    b = jax.random.normal(kb, (K,), dtype=jnp.float32) * 0.01

    r_logits, r_loss = _reference(x, targets, w, b, beta=1.0, gamma=1.0)

    # --- single-step fast path (whole reduction dim resident in VMEM) ---
    logits, loss = classification_and_mdca(x, targets, w, b, beta=1.0, gamma=1.0)
    logits, loss = jax.block_until_ready((logits, loss))
    assert jnp.allclose(logits, r_logits, atol=1e-4, rtol=1e-4)
    assert jnp.allclose(loss, r_loss, atol=1e-5, rtol=1e-5)

    # --- streamed / accumulated path (D tiled into 128-wide chunks) ---
    logits_t, loss_t = classification_and_mdca(x, targets, w, b, beta=1.0,
                                               gamma=1.0, block_k=128)
    logits_t, loss_t = jax.block_until_ready((logits_t, loss_t))
    assert jnp.allclose(logits_t, r_logits, atol=1e-4, rtol=1e-4)
    assert jnp.allclose(loss_t, r_loss, atol=1e-5, rtol=1e-5)

    print("KERNEL_OK")
</pallas_src>

<mosaic_0001>
module attributes {stable_mosaic.version = 11 : i64} {
  func.func @_cls_mdca_kernel(%arg0: i32, %arg1: memref<8x1024xf32, #tpu.memory_space<vmem>>, %arg2: memref<1024x128xf32, #tpu.memory_space<vmem>>, %arg3: memref<1x128xf32, #tpu.memory_space<vmem>>, %arg4: memref<8x1xi32, #tpu.memory_space<vmem>>, %arg5: memref<8x128xf32, #tpu.memory_space<vmem>>, %arg6: memref<1x128xf32, #tpu.memory_space<vmem>>) attributes {dimension_semantics = [#tpu.dimension_semantics<arbitrary>], iteration_bounds = array<i64: 1>, scalar_prefetch = 0 : i64, scratch_operands = 0 : i64, tpu.core_type = #tpu.core_type<tc>, window_params = [{transform_indices = @transform_0, window_bounds = array<i64: 8, 1024>}, {transform_indices = @transform_1, window_bounds = array<i64: 1024, 128>}, {pipeline_mode = #tpu.pipeline_mode<synchronous>, transform_indices = @transform_2, window_bounds = array<i64: 1, 128>}, {pipeline_mode = #tpu.pipeline_mode<synchronous>, transform_indices = @transform_3, window_bounds = array<i64: 8, 1>}, {pipeline_mode = #tpu.pipeline_mode<synchronous>, transform_indices = @transform_4, window_bounds = array<i64: 8, 128>}, {pipeline_mode = #tpu.pipeline_mode<synchronous>, transform_indices = @transform_5, window_bounds = array<i64: 1, 128>}]} {
    %c0_i32 = arith.constant 0 : i32
    %0 = arith.cmpi eq, %arg0, %c0_i32 : i32
    %1 = arith.extui %0 : i1 to i32
    %c0_i32_0 = arith.constant 0 : i32
    %2 = arith.cmpi ne, %1, %c0_i32_0 : i32
    scf.if %2 {
      %c0_10 = arith.constant 0 : index
      %c0_11 = arith.constant 0 : index
      %12 = vector.load %arg3[%c0_10, %c0_11] : memref<1x128xf32, #tpu.memory_space<vmem>>, vector<1x128xf32>
      %13 = vector.shape_cast %12 : vector<1x128xf32> to vector<1x128xf32>
      %14 = vector.broadcast %13 : vector<1x128xf32> to vector<8x128xf32>
      %c0_12 = arith.constant 0 : index
      %c0_13 = arith.constant 0 : index
      %15 = vector.load %arg5[%c0_12, %c0_13] : memref<8x128xf32, #tpu.memory_space<vmem>>, vector<8x128xf32>
      tpu.vector_store %arg5[%c0_12, %c0_13], %14 {strides = array<i32>} : memref<8x128xf32, #tpu.memory_space<vmem>>, vector<8x128xf32>,
    } else {
    }
    %c0 = arith.constant 0 : index
    %c0_1 = arith.constant 0 : index
    %3 = vector.load %arg5[%c0, %c0_1] : memref<8x128xf32, #tpu.memory_space<vmem>>, vector<8x128xf32>
    %c0_2 = arith.constant 0 : index
    %c0_3 = arith.constant 0 : index
    %4 = vector.load %arg1[%c0_2, %c0_3] : memref<8x1024xf32, #tpu.memory_space<vmem>>, vector<8x1024xf32>
    %c0_4 = arith.constant 0 : index
    %c0_5 = arith.constant 0 : index
    %5 = vector.load %arg2[%c0_4, %c0_5] : memref<1024x128xf32, #tpu.memory_space<vmem>>, vector<1024x128xf32>
    %cst = arith.constant dense<0.000000e+00> : vector<8x128xf32>
    %6 = tpu.matmul %4, %5, %cst {dimension_numbers = #tpu.dot_dimension_numbers<[1], [0], [0], [1], [0, 0, 1, 1], [], []>} : vector<8x1024xf32>, vector<1024x128xf32>, vector<8x128xf32> -> vector<8x128xf32>
    %7 = arith.addf %3, %6 : vector<8x128xf32>
    %c0_6 = arith.constant 0 : index
    %c0_7 = arith.constant 0 : index
    %8 = vector.load %arg5[%c0_6, %c0_7] : memref<8x128xf32, #tpu.memory_space<vmem>>, vector<8x128xf32>
    tpu.vector_store %arg5[%c0_6, %c0_7], %7 {strides = array<i32>} : memref<8x128xf32, #tpu.memory_space<vmem>>, vector<8x128xf32>,
    %c0_i32_8 = arith.constant 0 : i32
    %9 = arith.cmpi eq, %arg0, %c0_i32_8 : i32
    %10 = arith.extui %9 : i1 to i32
    %c0_i32_9 = arith.constant 0 : i32
    %11 = arith.cmpi ne, %10, %c0_i32_9 : i32
    scf.if %11 {
      %c0_10 = arith.constant 0 : index
      %c0_11 = arith.constant 0 : index
      %12 = vector.load %arg5[%c0_10, %c0_11] : memref<8x128xf32, #tpu.memory_space<vmem>>, vector<8x128xf32>
      %13 = tpu.iota {dimensions = array<i32: 1>} : vector<8x128xi32>
      %c10_i32 = arith.constant 10 : i32
      %14 = vector.broadcast %c10_i32 : i32 to vector<8x128xi32>
      %15 = arith.cmpi slt, %13, %14 : vector<8x128xi32>
      %16 = tpu.iota {dimensions = array<i32: 0>} : vector<8x1xi32>
      %c2_i32 = arith.constant 2 : i32
      %17 = vector.broadcast %c2_i32 : i32 to vector<8x1xi32>
      %18 = arith.cmpi slt, %16, %17 : vector<8x1xi32>
      %19 = arith.extui %18 : vector<8x1xi1> to vector<8x1xi32>
      %20 = arith.sitofp %19 : vector<8x1xi32> to vector<8x1xf32>
      %cst_12 = arith.constant -1.000000e+30 : f32
      %21 = vector.broadcast %cst_12 : f32 to vector<8x128xf32>
      %22 = arith.select %15, %12, %21 : vector<8x128xi1>, vector<8x128xf32>
      %cst_13 = arith.constant dense<0xFF800000> : vector<8xf32>
      %23 = vector.multi_reduction <maximumf>, %22, %cst_13 [1] : vector<8x128xf32> to vector<8xf32>
      %24 = vector.shape_cast %23 : vector<8xf32> to vector<8x1xf32>
      %25 = vector.broadcast %24 : vector<8x1xf32> to vector<8x128xf32>
      %26 = arith.subf %12, %25 : vector<8x128xf32>
      %27 = math.exp %26 : vector<8x128xf32>
      %cst_14 = arith.constant 0.000000e+00 : f32
      %28 = vector.broadcast %cst_14 : f32 to vector<8x128xf32>
      %29 = arith.select %15, %27, %28 : vector<8x128xi1>, vector<8x128xf32>
      %cst_15 = arith.constant dense<0.000000e+00> : vector<8xf32>
      %30 = vector.multi_reduction <add>, %29, %cst_15 [1] : vector<8x128xf32> to vector<8xf32>
      %31 = vector.shape_cast %30 : vector<8xf32> to vector<8x1xf32>
      %32 = math.log %31 : vector<8x1xf32>
      %33 = vector.broadcast %32 : vector<8x1xf32> to vector<8x128xf32>
      %34 = arith.subf %26, %33 : vector<8x128xf32>
      %35 = tpu.reciprocal %31 : vector<8x1xf32> -> vector<8x1xf32>
      %36 = vector.broadcast %35 : vector<8x1xf32> to vector<8x128xf32>
      %37 = arith.mulf %29, %36 : vector<8x128xf32>
      %c0_16 = arith.constant 0 : index
      %c0_17 = arith.constant 0 : index
      %38 = vector.load %arg4[%c0_16, %c0_17] : memref<8x1xi32, #tpu.memory_space<vmem>>, vector<8x1xi32>
      %39 = vector.broadcast %38 : vector<8x1xi32> to vector<8x128xi32>
      %40 = arith.cmpi eq, %13, %39 : vector<8x128xi32>
      %cst_18 = arith.constant 1.000000e+00 : f32
      %cst_19 = arith.constant 0.000000e+00 : f32
      %41 = vector.broadcast %cst_18 : f32 to vector<8x128xf32>
      %42 = vector.broadcast %cst_19 : f32 to vector<8x128xf32>
      %43 = arith.select %40, %41, %42 : vector<8x128xi1>, vector<8x128xf32>
      %44 = arith.mulf %34, %43 : vector<8x128xf32>
      %cst_20 = arith.constant dense<0.000000e+00> : vector<8xf32>
      %45 = vector.multi_reduction <add>, %44, %cst_20 [1] : vector<8x128xf32> to vector<8xf32>
      %46 = vector.shape_cast %45 : vector<8xf32> to vector<8x1xf32>
      %47 = math.exp %46 : vector<8x1xf32>
      %cst_21 = arith.constant 1.000000e+00 : f32
      %48 = vector.broadcast %cst_21 : f32 to vector<8x1xf32>
      %49 = arith.subf %48, %47 : vector<8x1xf32>
      %cst_22 = arith.constant -1.000000e+00 : f32
      %50 = vector.broadcast %cst_22 : f32 to vector<8x1xf32>
      %51 = arith.mulf %50, %49 : vector<8x1xf32>
      %52 = arith.mulf %51, %46 : vector<8x1xf32>
      %53 = arith.mulf %52, %20 : vector<8x1xf32>
      %54 = vector.shape_cast %53 : vector<8x1xf32> to vector<1x8x1xf32>
      %cst_23 = arith.constant dense<0.000000e+00> : vector<1xf32>
      %55 = vector.multi_reduction <add>, %54, %cst_23 [1, 2] : vector<1x8x1xf32> to vector<1xf32>
      %56 = vector.shape_cast %55 : vector<1xf32> to vector<1x1x1xf32>
      %57 = vector.extract %56[0, 0, 0] : f32 from vector<1x1x1xf32>
      %cst_24 = arith.constant 2.000000e+00 : f32
      %58 = arith.divf %57, %cst_24 : f32
      %59 = vector.broadcast %20 : vector<8x1xf32> to vector<8x128xf32>
      %60 = arith.mulf %37, %59 : vector<8x128xf32>
      %cst_25 = arith.constant dense<0.000000e+00> : vector<128xf32>
      %61 = vector.multi_reduction <add>, %60, %cst_25 [0] : vector<8x128xf32> to vector<128xf32>
      %62 = vector.shape_cast %61 : vector<128xf32> to vector<1x128xf32>
      %cst_26 = arith.constant 2.000000e+00 : f32
      %63 = vector.broadcast %cst_26 : f32 to vector<1x128xf32>
      %64 = arith.divf %62, %63 : vector<1x128xf32>
      %cst_27 = arith.constant dense<0.000000e+00> : vector<128xf32>
      %65 = vector.multi_reduction <add>, %43, %cst_27 [0] : vector<8x128xf32> to vector<128xf32>
      %66 = vector.shape_cast %65 : vector<128xf32> to vector<1x128xf32>
      %cst_28 = arith.constant 2.000000e+00 : f32
      %67 = vector.broadcast %cst_28 : f32 to vector<1x128xf32>
      %68 = arith.divf %66, %67 : vector<1x128xf32>
      %69 = arith.subf %64, %68 : vector<1x128xf32>
      %70 = math.absf %69 : vector<1x128xf32>
      %71 = vector.shape_cast %70 : vector<1x128xf32> to vector<1x1x128xf32>
      %cst_29 = arith.constant dense<0.000000e+00> : vector<1xf32>
      %72 = vector.multi_reduction <add>, %71, %cst_29 [1, 2] : vector<1x1x128xf32> to vector<1xf32>
      %73 = vector.shape_cast %72 : vector<1xf32> to vector<1x1x1xf32>
      %74 = vector.extract %73[0, 0, 0] : f32 from vector<1x1x1xf32>
      %cst_30 = arith.constant 1.000000e+01 : f32
      %75 = arith.divf %74, %cst_30 : f32
      %cst_31 = arith.constant 1.000000e+00 : f32
      %76 = arith.mulf %cst_31, %75 : f32
      %77 = arith.addf %58, %76 : f32
      %78 = vector.broadcast %77 : f32 to vector<1x1xf32>
      %79 = vector.shape_cast %78 : vector<1x1xf32> to vector<1x1xf32>
      %80 = vector.broadcast %79 : vector<1x1xf32> to vector<1x128xf32>
      %c0_32 = arith.constant 0 : index
      %c0_33 = arith.constant 0 : index
      %81 = vector.load %arg6[%c0_32, %c0_33] : memref<1x128xf32, #tpu.memory_space<vmem>>, vector<1x128xf32>
      tpu.vector_store %arg6[%c0_32, %c0_33], %80 {strides = array<i32>} : memref<1x128xf32, #tpu.memory_space<vmem>>, vector<1x128xf32>,
    } else {
    }
    return
  }
  func.func @transform_0(%arg0: i32) -> (i32, i32) {
    %c0_i32 = arith.constant 0 : i32
    %c0_i32_0 = arith.constant 0 : i32
    return %c0_i32, %arg0 : i32, i32
  }
  func.func @transform_1(%arg0: i32) -> (i32, i32) {
    %c0_i32 = arith.constant 0 : i32
    %c0_i32_0 = arith.constant 0 : i32
    return %arg0, %c0_i32 : i32, i32
  }
  func.func @transform_2(%arg0: i32) -> (i32, i32) {
    %c0_i32 = arith.constant 0 : i32
    %c0_i32_0 = arith.constant 0 : i32
    %c0_i32_1 = arith.constant 0 : i32
    return %c0_i32, %c0_i32_0 : i32, i32
  }
  func.func @transform_3(%arg0: i32) -> (i32, i32) {
    %c0_i32 = arith.constant 0 : i32
    %c0_i32_0 = arith.constant 0 : i32
    %c0_i32_1 = arith.constant 0 : i32
    return %c0_i32, %c0_i32_0 : i32, i32
  }
  func.func @transform_4(%arg0: i32) -> (i32, i32) {
    %c0_i32 = arith.constant 0 : i32
    %c0_i32_0 = arith.constant 0 : i32
    %c0_i32_1 = arith.constant 0 : i32
    return %c0_i32, %c0_i32_0 : i32, i32
  }
  func.func @transform_5(%arg0: i32) -> (i32, i32) {
    %c0_i32 = arith.constant 0 : i32
    %c0_i32_0 = arith.constant 0 : i32
    %c0_i32_1 = arith.constant 0 : i32
    return %c0_i32, %c0_i32_0 : i32, i32
  }
}

</mosaic_0001>

<llo_original>
// kernel: tpu_custom_call.1
$region0: #{tpu_custom_call.1}
  #allocation0 [shape = 'u32[]', space=smem, size = 0x4, offset = 0x4, fixed_abs, tag = 'smem constant byte address 0x4 - core index']
  #allocation1 [shape = 'u32[72,128]{1,0:T(1,128)}', space=vmem, size = 0x9000, scoped, tag = 'internal scratch']
  %s0 = inlined_call_operand.hbm [shape: f32[8,1024], index: 0, kind: input, shape index: {}]
  %s1 = inlined_call_operand.hbm [shape: f32[1024,128], index: 1, kind: input, shape index: {}]
  %s2 = inlined_call_operand.vmem [shape: f32[1,128], index: 2, kind: input, shape index: {}]
  %s3 = inlined_call_operand.vmem [shape: s32[8,1], index: 3, kind: input, shape index: {}]
  %s4 = inlined_call_operand.hbm [shape: f32[8,128], index: 4, kind: output, shape index: {0}]
  %s5 = inlined_call_operand.hbm [shape: f32[1,128], index: 5, kind: output, shape index: {1}]
  %6 = xla_tuple %s4, %s5
  %s7 = sld [smem:[#allocation0]]
  $region50: #{tpu_custom_call.1} parent=0
    _
  %s9 = ssub.s32 1, %s7
  %s10 = scalar_select 0, %s9, %s7
  $region1: #{tpu_custom_call.1} parent=0
    #allocation2 [shape = 'u8[32768]{0}', space=vmem, size = 0x8000, scoped, tag = 'input window, operand 0, single buffered']
    #allocation3 [shape = 's32[1]{0}', space=sflag, size = 0x4, scoped, tag = 'scoped memory for tpu_custom_call.1']
    #allocation4 [shape = 's32[1]{0}', space=sflag, size = 0x4, scoped, tag = 'scoped memory for tpu_custom_call.1']
    #allocation5 [shape = 'u8[524288]{0}', space=vmem, size = 0x80000, scoped, tag = 'input window, operand 1, single buffered']
    #allocation6 [shape = 's32[1]{0}', space=sflag, size = 0x4, scoped, tag = 'scoped memory for tpu_custom_call.1']
    #allocation7 [shape = 'u8[4096]{0}', space=vmem, size = 0x1000, scoped, tag = 'output window, operand 0, single buffered']
    #allocation8 [shape = 'u8[512]{0}', space=vmem, size = 0x400, scoped, tag = 'output window, operand 1, single buffered']
    #allocation9 [shape = 's32[1]{0}', space=sflag, size = 0x4, scoped, tag = 'scoped memory for tpu_custom_call.1']
    %11 = vsyncpa [#allocation3], 0
    %12 = vsyncpa [#allocation6], 0
    %13 = vsyncpa [#allocation4], 0
    %14 = vsyncpa [#allocation9], 0
    // Predicated region
    $region2: #{tpu_custom_call.1} parent=1 // pred_check
      _
    $region3: #{tpu_custom_call.1} parent=1 // pred_check_branch
      %16 = sbr.rel (0) target = $region5
    $region4: #{tpu_custom_call.1} parent=1 // pred_region
      %18 = vsyncadd [#allocation3], 0
      %s20 = sshll.u32 %s0, 4
      %s21 = int_to_ptr.hbm [resolvable:$true] %s20
      %s22 = sshll.u32 [#allocation2], 4
      %s23 = int_to_ptr.vmem [resolvable:$true] %s22
      %25 = dma.hbm_to_vmem [thread:$0]  %s21, 1024, %s23, [#allocation3]
    $region5: #{tpu_custom_call.1} parent=1 // pred_fallthru
      _
    // Predicated region
    $region6: #{tpu_custom_call.1} parent=1 // pred_check
      _
    $region7: #{tpu_custom_call.1} parent=1 // pred_check_branch
      %27 = sbr.rel (0) target = $region9
    $region8: #{tpu_custom_call.1} parent=1 // pred_region
      %29 = vsyncadd [#allocation6], 0
      %s30 = sshll.u32 %s1, 4
      %s31 = int_to_ptr.hbm [resolvable:$true] %s30
      %s32 = sshll.u32 [#allocation5], 4
      %s33 = int_to_ptr.vmem [resolvable:$true] %s32
      %38 = dma.hbm_to_vmem [thread:$0]  %s31, 16384, %s33, [#allocation6], 128, 128, 8
    $region9: #{tpu_custom_call.1} parent=1 // pred_fallthru
      _
    // Predicated region
    $region10: #{tpu_custom_call.1} parent=1 // pred_check
      _
    $region11: #{tpu_custom_call.1} parent=1 // pred_check_branch
      %40 = sbr.rel (0) target = $region13
    $region12: #{tpu_custom_call.1} parent=1 // pred_region
      _
    $region13: #{tpu_custom_call.1} parent=1 // pred_fallthru
      _
    // Predicated region
    $region14: #{tpu_custom_call.1} parent=1 // pred_check
      _
    $region15: #{tpu_custom_call.1} parent=1 // pred_check_branch
      %42 = sbr.rel (0) target = $region17
    $region16: #{tpu_custom_call.1} parent=1 // pred_region
      _
    $region17: #{tpu_custom_call.1} parent=1 // pred_fallthru
      _
    // Predicated region
    $region18: #{tpu_custom_call.1} parent=1 // pred_check
      _
    $region19: #{tpu_custom_call.1} parent=1 // pred_check_branch
      %44 = sbr.rel (0) target = $region21
    $region20: #{tpu_custom_call.1} parent=1 // pred_region
      %46 = dma.done [#allocation3], 1024
    $region21: #{tpu_custom_call.1} parent=1 // pred_fallthru
      _
    // Predicated region
    $region22: #{tpu_custom_call.1} parent=1 // pred_check
      _
    $region23: #{tpu_custom_call.1} parent=1 // pred_check_branch
      %48 = sbr.rel (0) target = $region25
    $region24: #{tpu_custom_call.1} parent=1 // pred_region
      %50 = dma.done [#allocation6], 16384
    $region25: #{tpu_custom_call.1} parent=1 // pred_fallthru
      _
    %p51 = scmp.eq.s32.totalorder 0, 0
    // Predicated region
    $region26: #{tpu_custom_call.1} parent=1 // pred_check
      %p52 = pneg %p51
    $region27: #{tpu_custom_call.1} parent=1 // pred_check_branch
      %54 = sbr.rel (%p52) target = $region29
    $region28: #{tpu_custom_call.1} parent=1 // pred_region
      %v55 = vld [vmem:[%s2] sm:$0x1]
      %v57 = vperm.slane %v55, 0
      %59 = vst [vmem:[#allocation7] sm:$0xff] %v57
    $region29: #{tpu_custom_call.1} parent=1 // pred_fallthru
      _
    %v60 = vld [vmem:[#allocation7] sm:$0xff]
    %v61 = vld [vmem:[#allocation2] sm:$0xff]
    %v62 = vld [vmem:[#allocation2 + $0x8] sm:$0xff]
    %v63 = vld [vmem:[#allocation2 + $0x10] sm:$0xff]
    %v64 = vld [vmem:[#allocation2 + $0x18] sm:$0xff]
    %v65 = vld [vmem:[#allocation2 + $0x20] sm:$0xff]
    %v66 = vld [vmem:[#allocation2 + $0x28] sm:$0xff]
    %v67 = vld [vmem:[#allocation2 + $0x30] sm:$0xff]
    %v68 = vld [vmem:[#allocation2 + $0x38] sm:$0xff]
    %v69 = vld [vmem:[#allocation5] sm:$0xff]
    %v70 = vld [vmem:[#allocation5 + $0x8] sm:$0xff]
    %v71 = vld [vmem:[#allocation5 + $0x10] sm:$0xff]
    %v72 = vld [vmem:[#allocation5 + $0x18] sm:$0xff]
    %v73 = vld [vmem:[#allocation5 + $0x20] sm:$0xff]
    %v74 = vld [vmem:[#allocation5 + $0x28] sm:$0xff]
    %v75 = vld [vmem:[#allocation5 + $0x30] sm:$0xff]
    %v76 = vld [vmem:[#allocation5 + $0x38] sm:$0xff]
    %v77 = vld [vmem:[#allocation5 + $0x40] sm:$0xff]
    %v78 = vld [vmem:[#allocation5 + $0x48] sm:$0xff]
    %v79 = vld [vmem:[#allocation5 + $0x50] sm:$0xff]
    %v80 = vld [vmem:[#allocation5 + $0x58] sm:$0xff]
    %v81 = vld [vmem:[#allocation5 + $0x60] sm:$0xff]
    %v82 = vld [vmem:[#allocation5 + $0x68] sm:$0xff]
    %v83 = vld [vmem:[#allocation5 + $0x70] sm:$0xff]
    %v84 = vld [vmem:[#allocation5 + $0x78] sm:$0xff]
    %v85 = vld [vmem:[#allocation5 + $0x80] sm:$0xff]
    %v86 = vld [vmem:[#allocation5 + $0x88] sm:$0xff]
    %v87 = vld [vmem:[#allocation5 + $0x90] sm:$0xff]
    %v88 = vld [vmem:[#allocation5 + $0x98] sm:$0xff]
    %v89 = vld [vmem:[#allocation5 + $0xa0] sm:$0xff]
    %v90 = vld [vmem:[#allocation5 + $0xa8] sm:$0xff]
    %v91 = vld [vmem:[#allocation5 + $0xb0] sm:$0xff]
    %v92 = vld [vmem:[#allocation5 + $0xb8] sm:$0xff]
    %v93 = vld [vmem:[#allocation5 + $0xc0] sm:$0xff]
    %v94 = vld [vmem:[#allocation5 + $0xc8] sm:$0xff]
    %v95 = vld [vmem:[#allocation5 + $0xd0] sm:$0xff]
    %v96 = vld [vmem:[#allocation5 + $0xd8] sm:$0xff]
    %v97 = vld [vmem:[#allocation5 + $0xe0] sm:$0xff]
    %v98 = vld [vmem:[#allocation5 + $0xe8] sm:$0xff]
    %v99 = vld [vmem:[#allocation5 + $0xf0] sm:$0xff]
    %v100 = vld [vmem:[#allocation5 + $0xf8] sm:$0xff]
    %v101 = vld [vmem:[#allocation5 + $0x100] sm:$0xff]
    %v102 = vld [vmem:[#allocation5 + $0x108] sm:$0xff]
    %v103 = vld [vmem:[#allocation5 + $0x110] sm:$0xff]
    %v104 = vld [vmem:[#allocation5 + $0x118] sm:$0xff]
    %v105 = vld [vmem:[#allocation5 + $0x120] sm:$0xff]
    %v106 = vld [vmem:[#allocation5 + $0x128] sm:$0xff]
    %v107 = vld [vmem:[#allocation5 + $0x130] sm:$0xff]
    %v108 = vld [vmem:[#allocation5 + $0x138] sm:$0xff]
    %v109 = vld [vmem:[#allocation5 + $0x140] sm:$0xff]
    %v110 = vld [vmem:[#allocation5 + $0x148] sm:$0xff]
    %v111 = vld [vmem:[#allocation5 + $0x150] sm:$0xff]
    %v112 = vld [vmem:[#allocation5 + $0x158] sm:$0xff]
    %v113 = vld [vmem:[#allocation5 + $0x160] sm:$0xff]
    %v114 = vld [vmem:[#allocation5 + $0x168] sm:$0xff]
    %v115 = vld [vmem:[#allocation5 + $0x170] sm:$0xff]
    %v116 = vld [vmem:[#allocation5 + $0x178] sm:$0xff]
    %v117 = vld [vmem:[#allocation5 + $0x180] sm:$0xff]
    %v118 = vld [vmem:[#allocation5 + $0x188] sm:$0xff]
    %v119 = vld [vmem:[#allocation5 + $0x190] sm:$0xff]
    %v120 = vld [vmem:[#allocation5 + $0x198] sm:$0xff]
    %v121 = vld [vmem:[#allocation5 + $0x1a0] sm:$0xff]
    %v122 = vld [vmem:[#allocation5 + $0x1a8] sm:$0xff]
    %v123 = vld [vmem:[#allocation5 + $0x1b0] sm:$0xff]
    %v124 = vld [vmem:[#allocation5 + $0x1b8] sm:$0xff]
    %v125 = vld [vmem:[#allocation5 + $0x1c0] sm:$0xff]
    %v126 = vld [vmem:[#allocation5 + $0x1c8] sm:$0xff]
    %v127 = vld [vmem:[#allocation5 + $0x1d0] sm:$0xff]
    %v128 = vld [vmem:[#allocation5 + $0x1d8] sm:$0xff]
    %v129 = vld [vmem:[#allocation5 + $0x1e0] sm:$0xff]
    %v130 = vld [vmem:[#allocation5 + $0x1e8] sm:$0xff]
    %v131 = vld [vmem:[#allocation5 + $0x1f0] sm:$0xff]
    %v132 = vld [vmem:[#allocation5 + $0x1f8] sm:$0xff]
    %v133 = vld [vmem:[#allocation5 + $0x200] sm:$0xff]
    %v134 = vld [vmem:[#allocation5 + $0x208] sm:$0xff]
    %v135 = vld [vmem:[#allocation5 + $0x210] sm:$0xff]
    %v136 = vld [vmem:[#allocation5 + $0x218] sm:$0xff]
    %v137 = vld [vmem:[#allocation5 + $0x220] sm:$0xff]
    %v138 = vld [vmem:[#allocation5 + $0x228] sm:$0xff]
    %v139 = vld [vmem:[#allocation5 + $0x230] sm:$0xff]
    %v140 = vld [vmem:[#allocation5 + $0x238] sm:$0xff]
    %v141 = vld [vmem:[#allocation5 + $0x240] sm:$0xff]
    %v142 = vld [vmem:[#allocation5 + $0x248] sm:$0xff]
    %v143 = vld [vmem:[#allocation5 + $0x250] sm:$0xff]
    %v144 = vld [vmem:[#allocation5 + $0x258] sm:$0xff]
    %v145 = vld [vmem:[#allocation5 + $0x260] sm:$0xff]
    %v146 = vld [vmem:[#allocation5 + $0x268] sm:$0xff]
    %v147 = vld [vmem:[#allocation5 + $0x270] sm:$0xff]
    %v148 = vld [vmem:[#allocation5 + $0x278] sm:$0xff]
    %v149 = vld [vmem:[#allocation5 + $0x280] sm:$0xff]
    %v150 = vld [vmem:[#allocation5 + $0x288] sm:$0xff]
    %v151 = vld [vmem:[#allocation5 + $0x290] sm:$0xff]
    %v152 = vld [vmem:[#allocation5 + $0x298] sm:$0xff]
    %v153 = vld [vmem:[#allocation5 + $0x2a0] sm:$0xff]
    %v154 = vld [vmem:[#allocation5 + $0x2a8] sm:$0xff]
    %v155 = vld [vmem:[#allocation5 + $0x2b0] sm:$0xff]
    %v156 = vld [vmem:[#allocation5 + $0x2b8] sm:$0xff]
    %v157 = vld [vmem:[#allocation5 + $0x2c0] sm:$0xff]
    %v158 = vld [vmem:[#allocation5 + $0x2c8] sm:$0xff]
    %v159 = vld [vmem:[#allocation5 + $0x2d0] sm:$0xff]
    %v160 = vld [vmem:[#allocation5 + $0x2d8] sm:$0xff]
    %v161 = vld [vmem:[#allocation5 + $0x2e0] sm:$0xff]
    %v162 = vld [vmem:[#allocation5 + $0x2e8] sm:$0xff]
    %v163 = vld [vmem:[#allocation5 + $0x2f0] sm:$0xff]
    %v164 = vld [vmem:[#allocation5 + $0x2f8] sm:$0xff]
    %v165 = vld [vmem:[#allocation5 + $0x300] sm:$0xff]
    %v166 = vld [vmem:[#allocation5 + $0x308] sm:$0xff]
    %v167 = vld [vmem:[#allocation5 + $0x310] sm:$0xff]
    %v168 = vld [vmem:[#allocation5 + $0x318] sm:$0xff]
    %v169 = vld [vmem:[#allocation5 + $0x320] sm:$0xff]
    %v170 = vld [vmem:[#allocation5 + $0x328] sm:$0xff]
    %v171 = vld [vmem:[#allocation5 + $0x330] sm:$0xff]
    %v172 = vld [vmem:[#allocation5 + $0x338] sm:$0xff]
    %v173 = vld [vmem:[#allocation5 + $0x340] sm:$0xff]
    %v174 = vld [vmem:[#allocation5 + $0x348] sm:$0xff]
    %v175 = vld [vmem:[#allocation5 + $0x350] sm:$0xff]
    %v176 = vld [vmem:[#allocation5 + $0x358] sm:$0xff]
    %v177 = vld [vmem:[#allocation5 + $0x360] sm:$0xff]
    %v178 = vld [vmem:[#allocation5 + $0x368] sm:$0xff]
    %v179 = vld [vmem:[#allocation5 + $0x370] sm:$0xff]
    %v180 = vld [vmem:[#allocation5 + $0x378] sm:$0xff]
    %v181 = vld [vmem:[#allocation5 + $0x380] sm:$0xff]
    %v182 = vld [vmem:[#allocation5 + $0x388] sm:$0xff]
    %v183 = vld [vmem:[#allocation5 + $0x390] sm:$0xff]
    %v184 = vld [vmem:[#allocation5 + $0x398] sm:$0xff]
    %v185 = vld [vmem:[#allocation5 + $0x3a0] sm:$0xff]
    %v186 = vld [vmem:[#allocation5 + $0x3a8] sm:$0xff]
    %v187 = vld [vmem:[#allocation5 + $0x3b0] sm:$0xff]
    %v188 = vld [vmem:[#allocation5 + $0x3b8] sm:$0xff]
    %v189 = vld [vmem:[#allocation5 + $0x3c0] sm:$0xff]
    %v190 = vld [vmem:[#allocation5 + $0x3c8] sm:$0xff]
    %v191 = vld [vmem:[#allocation5 + $0x3d0] sm:$0xff]
    %v192 = vld [vmem:[#allocation5 + $0x3d8] sm:$0xff]
    %v193 = vld [vmem:[#allocation5 + $0x3e0] sm:$0xff]
    %v194 = vld [vmem:[#allocation5 + $0x3e8] sm:$0xff]
    %v195 = vld [vmem:[#allocation5 + $0x3f0] sm:$0xff]
    %v196 = vld [vmem:[#allocation5 + $0x3f8] sm:$0xff]
    %197 = vmatpush.msra.mxu0 %v84
    %198 = vmatpush.msra.mxu0 %v83
    %199 = vmatpush.msra.mxu0 %v82
    %200 = vmatpush.msra.mxu0 %v81
    %201 = vmatpush.msra.mxu0 %v80
    %202 = vmatpush.msra.mxu0 %v79
    %203 = vmatpush.msra.mxu0 %v78
    %204 = vmatpush.msra.mxu0 %v77
    %205 = vmatpush.msra.mxu0 %v76
    %206 = vmatpush.msra.mxu0 %v75
    %207 = vmatpush.msra.mxu0 %v74
    %208 = vmatpush.msra.mxu0 %v73
    %209 = vmatpush.msra.mxu0 %v72
    %210 = vmatpush.msra.mxu0 %v71
    %211 = vmatpush.msra.mxu0 %v70
    %212 = vmatpush.msra.mxu0 %v69
    %213 = vmatmul.f32.gmra.mxu0 %v61
    %v214 = vpop.f32.mrf.mxu0
    %v215 = vadd.f32 0.0, %v214
    %216 = vdwg.mxu0
    %217 = vmatpush.msra.mxu0 %v100
    %218 = vmatpush.msra.mxu0 %v99
    %219 = vmatpush.msra.mxu0 %v98
    %220 = vmatpush.msra.mxu0 %v97
    %221 = vmatpush.msra.mxu0 %v96
    %222 = vmatpush.msra.mxu0 %v95
    %223 = vmatpush.msra.mxu0 %v94
    %224 = vmatpush.msra.mxu0 %v93
    %225 = vmatpush.msra.mxu0 %v92
    %226 = vmatpush.msra.mxu0 %v91
    %227 = vmatpush.msra.mxu0 %v90
    %228 = vmatpush.msra.mxu0 %v89
    %229 = vmatpush.msra.mxu0 %v88
    %230 = vmatpush.msra.mxu0 %v87
    %231 = vmatpush.msra.mxu0 %v86
    %232 = vmatpush.msra.mxu0 %v85
    %233 = vmatmul.f32.gmra.mxu0 %v62
    %v234 = vpop.f32.mrf.mxu0
    %v235 = vadd.f32 %v215, %v234
    %236 = vdwg.mxu0
    %237 = vmatpush.msra.mxu0 %v116
    %238 = vmatpush.msra.mxu0 %v115
    %239 = vmatpush.msra.mxu0 %v114
    %240 = vmatpush.msra.mxu0 %v113
    %241 = vmatpush.msra.mxu0 %v112
    %242 = vmatpush.msra.mxu0 %v111
    %243 = vmatpush.msra.mxu0 %v110
    %244 = vmatpush.msra.mxu0 %v109
    %245 = vmatpush.msra.mxu0 %v108
    %246 = vmatpush.msra.mxu0 %v107
    %247 = vmatpush.msra.mxu0 %v106
    %248 = vmatpush.msra.mxu0 %v105
    %249 = vmatpush.msra.mxu0 %v104
    %250 = vmatpush.msra.mxu0 %v103
    %251 = vmatpush.msra.mxu0 %v102
    %252 = vmatpush.msra.mxu0 %v101
    %253 = vmatmul.f32.gmra.mxu0 %v63
    %v254 = vpop.f32.mrf.mxu0
    %v255 = vadd.f32 %v235, %v254
    %256 = vdwg.mxu0
    %257 = vmatpush.msra.mxu0 %v132
    %258 = vmatpush.msra.mxu0 %v131
    %259 = vmatpush.msra.mxu0 %v130
    %260 = vmatpush.msra.mxu0 %v129
    %261 = vmatpush.msra.mxu0 %v128
    %262 = vmatpush.msra.mxu0 %v127
    %263 = vmatpush.msra.mxu0 %v126
    %264 = vmatpush.msra.mxu0 %v125
    %265 = vmatpush.msra.mxu0 %v124
    %266 = vmatpush.msra.mxu0 %v123
    %267 = vmatpush.msra.mxu0 %v122
    %268 = vmatpush.msra.mxu0 %v121
    %269 = vmatpush.msra.mxu0 %v120
    %270 = vmatpush.msra.mxu0 %v119
    %271 = vmatpush.msra.mxu0 %v118
    %272 = vmatpush.msra.mxu0 %v117
    %273 = vmatmul.f32.gmra.mxu0 %v64
    %v274 = vpop.f32.mrf.mxu0
    %v275 = vadd.f32 %v255, %v274
    %276 = vdwg.mxu0
    %277 = vmatpush.msra.mxu0 %v148
    %278 = vmatpush.msra.mxu0 %v147
    %279 = vmatpush.msra.mxu0 %v146
    %280 = vmatpush.msra.mxu0 %v145
    %281 = vmatpush.msra.mxu0 %v144
    %282 = vmatpush.msra.mxu0 %v143
    %283 = vmatpush.msra.mxu0 %v142
    %284 = vmatpush.msra.mxu0 %v141
    %285 = vmatpush.msra.mxu0 %v140
    %286 = vmatpush.msra.mxu0 %v139
    %287 = vmatpush.msra.mxu0 %v138
    %288 = vmatpush.msra.mxu0 %v137
    %289 = vmatpush.msra.mxu0 %v136
    %290 = vmatpush.msra.mxu0 %v135
    %291 = vmatpush.msra.mxu0 %v134
    %292 = vmatpush.msra.mxu0 %v133
    %293 = vmatmul.f32.gmra.mxu0 %v65
    %v294 = vpop.f32.mrf.mxu0
    %v295 = vadd.f32 %v275, %v294
    %296 = vdwg.mxu0
    %297 = vmatpush.msra.mxu0 %v164
    %298 = vmatpush.msra.mxu0 %v163
    %299 = vmatpush.msra.mxu0 %v162
    %300 = vmatpush.msra.mxu0 %v161
    %301 = vmatpush.msra.mxu0 %v160
    %302 = vmatpush.msra.mxu0 %v159
    %303 = vmatpush.msra.mxu0 %v158
    %304 = vmatpush.msra.mxu0 %v157
    %305 = vmatpush.msra.mxu0 %v156
    %306 = vmatpush.msra.mxu0 %v155
    %307 = vmatpush.msra.mxu0 %v154
    %308 = vmatpush.msra.mxu0 %v153
    %309 = vmatpush.msra.mxu0 %v152
    %310 = vmatpush.msra.mxu0 %v151
    %311 = vmatpush.msra.mxu0 %v150
    %312 = vmatpush.msra.mxu0 %v149
    %313 = vmatmul.f32.gmra.mxu0 %v66
    %v314 = vpop.f32.mrf.mxu0
    %v315 = vadd.f32 %v295, %v314
    %316 = vdwg.mxu0
    %317 = vmatpush.msra.mxu0 %v180
    %318 = vmatpush.msra.mxu0 %v179
    %319 = vmatpush.msra.mxu0 %v178
    %320 = vmatpush.msra.mxu0 %v177
    %321 = vmatpush.msra.mxu0 %v176
    %322 = vmatpush.msra.mxu0 %v175
    %323 = vmatpush.msra.mxu0 %v174
    %324 = vmatpush.msra.mxu0 %v173
    %325 = vmatpush.msra.mxu0 %v172
    %326 = vmatpush.msra.mxu0 %v171
    %327 = vmatpush.msra.mxu0 %v170
    %328 = vmatpush.msra.mxu0 %v169
    %329 = vmatpush.msra.mxu0 %v168
    %330 = vmatpush.msra.mxu0 %v167
    %331 = vmatpush.msra.mxu0 %v166
    %332 = vmatpush.msra.mxu0 %v165
    %333 = vmatmul.f32.gmra.mxu0 %v67
    %v334 = vpop.f32.mrf.mxu0
    %v335 = vadd.f32 %v315, %v334
    %336 = vdwg.mxu0
    %337 = vmatpush.msra.mxu0 %v196
    %338 = vmatpush.msra.mxu0 %v195
    %339 = vmatpush.msra.mxu0 %v194
    %340 = vmatpush.msra.mxu0 %v193
    %341 = vmatpush.msra.mxu0 %v192
    %342 = vmatpush.msra.mxu0 %v191
    %343 = vmatpush.msra.mxu0 %v190
    %344 = vmatpush.msra.mxu0 %v189
    %345 = vmatpush.msra.mxu0 %v188
    %346 = vmatpush.msra.mxu0 %v187
    %347 = vmatpush.msra.mxu0 %v186
    %348 = vmatpush.msra.mxu0 %v185
    %349 = vmatpush.msra.mxu0 %v184
    %350 = vmatpush.msra.mxu0 %v183
    %351 = vmatpush.msra.mxu0 %v182
    %352 = vmatpush.msra.mxu0 %v181
    %353 = vmatmul.f32.gmra.mxu0 %v68
    %v354 = vpop.f32.mrf.mxu0
    %v355 = vadd.f32 %v335, %v354
    %356 = vdwg.mxu0
    %v357 = vadd.f32 %v60, %v355
    %358 = vst [vmem:[#allocation7] sm:$0xff] %v357
    // Predicated region
    $region30: #{tpu_custom_call.1} parent=1 // pred_check
      %p359 = pneg %p51
    $region31: #{tpu_custom_call.1} parent=1 // pred_check_branch
      %361 = sbr.rel (%p359) target = $region33
    $region32: #{tpu_custom_call.1} parent=1 // pred_region
      %v362 = vld [vmem:[#allocation7] sm:$0xff]
      %v363 = vlaneseq
      %v364 = vand.u32 %v363, 127
      %vm365 = vcmp.lt.s32.totalorder %v364, 10
      %v366 = vlaneseq
      %v367 = vshrl.u32 %v366, 7
      %vm368 = vcmp.lt.s32.totalorder %v367, 2
      %v369 = vsel %vm368, 1, 0
      %v370 = vcvt.s32.f32 %v369
      %v371 = vsel %vm365, %v362, -1e+30
      %372 = vmax.xlane.f32.xlu0 %v371
      %v373 = vpop.xlane.xlu0 %372
      %v374 = vsub.f32 %v362, %v373
      %v375 = vmul.f32 %v374, 1.442695
      %v376 = vpow.pop %v375
      %v377 = vsel %vm365, %v376, 0.0
      %378 = vadd.xlane.f32.xlu0 %v377
      %v379 = vpop.xlane.xlu0 %378
      %v380 = vlog2.pop %v379
      %v381 = vmul.f32 %v380, 0.6931472
      %v382 = vsub.f32 %v374, %v381
      %v383 = vrcp.pop %v379
      %v384 = vmul.f32 %v379, %v383
      %v385 = vsub.f32 1.0, %v384
      %v386 = vmul.f32 %v383, %v385
      %v387 = vadd.f32 %v383, %v386
      %vm388 = vweird.f32 %v379
      %vm389 = vweird.f32 %v383
      %vm390 = vmor %vm388, %vm389
      %v391 = vsel %vm390, %v383, %v387
      %v392 = vand.u32 2147483647, %v379
      %vm393 = vcmp.eq.f32.partialorder %v392, 8.507059e+37
      %v394 = vand.u32 %v379, 2147483648
      %v395 = vor.u32 1.1754944e-38, %v394
      %v396 = vsel %vm393, %v395, %v391
      %v397 = vmul.f32 %v377, %v396
      %v398 = vld [vmem:[%s3] sm:$0xff]
      %399 = vset.pattern.permute.xlu0 0
      %400 = vperm.xlu0 %399, %v398
      %v401 = vpop.permute.xlu0 %400
      %vm402 = vcmp.eq.s32.totalorder %v364, %v401
      %v403 = vsel %vm402, 1.0, 0.0
      %v404 = vmul.f32 %v382, %v403
      %405 = vadd.xlane.f32.xlu0 %v404
      %v406 = vpop.xlane.xlu0 %405
      %v407 = vmul.f32 %v406, 1.442695
      %v408 = vpow.pop %v407
      %v409 = vsub.f32 1.0, %v408
      %v410 = vmul.f32 %v409, -1.0
      %v411 = vmul.f32 %v410, %v406
      %v412 = vmul.f32 %v411, %v370
      %vm413 = vcmask 7168
      %v414 = vsel %vm413, %v412, 0.0
      %415 = vadd.xlane.f32.xlu0 %v414
      %v416 = vpop.xlane.xlu0 %415
      %v417 = vrot.slane %v416, 4
      %v418 = vadd.f32 %v416, %v417
      %v419 = vrot.slane %v418, 2
      %v420 = vadd.f32 %v418, %v419
      %v421 = vrot.slane %v420, 1
      %v422 = vadd.f32 %v420, %v421
      %s423 = vtos %v422
      %v424 = vrcp.pop 2.0
      %v425 = vmul.f32 2.0, %v424
      %v426 = vsub.f32 1.0, %v425
      %v427 = vmul.f32 %v424, %v426
      %v428 = vadd.f32 %v424, %v427
      %vm429 = vweird.f32 %v424
      %v430 = vsel %vm429, %v424, %v428
      %s431 = vtos %v430
      %s432 = smul.f32 %s423, %s431
      %v433 = vmul.f32 %v397, %v370
      %v434 = vrot.slane %v433, 4
      %v435 = vadd.f32 %v433, %v434
      %v436 = vrot.slane %v435, 2
      %v437 = vadd.f32 %v435, %v436
      %v438 = vrot.slane %v437, 1
      %v439 = vadd.f32 %v437, %v438
      %v440 = vrcp.pop 2.0
      %v441 = vmul.f32 2.0, %v440
      %v442 = vsub.f32 1.0, %v441
      %v443 = vmul.f32 %v440, %v442
      %v444 = vadd.f32 %v440, %v443
      %vm445 = vweird.f32 %v440
      %v446 = vsel %vm445, %v440, %v444
      %v447 = vmul.f32 %v439, %v446
      %v448 = vrot.slane %v403, 4
      %v449 = vadd.f32 %v403, %v448
      %v450 = vrot.slane %v449, 2
      %v451 = vadd.f32 %v449, %v450
      %v452 = vrot.slane %v451, 1
      %v453 = vadd.f32 %v451, %v452
      %v454 = vmul.f32 %v453, %v446
      %v455 = vsub.f32 %v447, %v454
      %v456 = vand.u32 2147483647, %v455
      %vm457 = vcmask 1040384
      %v458 = vsel %vm457, %v456, 0.0
      %459 = vadd.xlane.f32.xlu0 %v458
      %v460 = vpop.xlane.xlu0 %459
      %v461 = vrot.slane %v460, 4
      %v462 = vadd.f32 %v460, %v461
      %v463 = vrot.slane %v462, 2
      %v464 = vadd.f32 %v462, %v463
      %v465 = vrot.slane %v464, 1
      %v466 = vadd.f32 %v464, %v465
      %s467 = vtos %v466
      %v468 = vrcp.pop 10.0
      %v469 = vmul.f32 10.0, %v468
      %v470 = vsub.f32 1.0, %v469
      %v471 = vmul.f32 %v468, %v470
      %v472 = vadd.f32 %v468, %v471
      %vm473 = vweird.f32 %v468
      %v474 = vsel %vm473, %v468, %v472
      %s475 = vtos %v474
      %s476 = smul.f32 %s467, %s475
      %s477 = sadd.f32 %s432, %s476
      %v478 = vstv %s477
      %479 = vst [vmem:[#allocation8] sm:$0x1] %v478
    $region33: #{tpu_custom_call.1} parent=1 // pred_fallthru
      _
    // Predicated region
    $region34: #{tpu_custom_call.1} parent=1 // pred_check
      _
    $region35: #{tpu_custom_call.1} parent=1 // pred_check_branch
      %481 = sbr.rel (0) target = $region37
    $region36: #{tpu_custom_call.1} parent=1 // pred_region
      %483 = vsyncadd [#allocation4], 0
      %s485 = sshll.u32 [#allocation7], 4
      %s486 = int_to_ptr.vmem [resolvable:$true] %s485
      %s487 = sshll.u32 %s4, 4
      %s488 = int_to_ptr.hbm [resolvable:$true] %s487
      %490 = dma.vmem_to_hbm [thread:$0]  %s486, 128, %s488, [#allocation4]
    $region37: #{tpu_custom_call.1} parent=1 // pred_fallthru
      _
    // Predicated region
    $region38: #{tpu_custom_call.1} parent=1 // pred_check
      _
    $region39: #{tpu_custom_call.1} parent=1 // pred_check_branch
      %492 = sbr.rel (0) target = $region41
    $region40: #{tpu_custom_call.1} parent=1 // pred_region
      %494 = vsyncadd [#allocation9], 0
      %s496 = sshll.u32 [#allocation8], 4
      %s497 = int_to_ptr.vmem [resolvable:$true] %s496
      %s498 = sshll.u32 %s5, 4
      %s499 = int_to_ptr.hbm [resolvable:$true] %s498
      %501 = dma.vmem_to_hbm [thread:$0]  %s497, 16, %s499, [#allocation9]
    $region41: #{tpu_custom_call.1} parent=1 // pred_fallthru
      _
    // Predicated region
    $region42: #{tpu_custom_call.1} parent=1 // pred_check
      _
    $region43: #{tpu_custom_call.1} parent=1 // pred_check_branch
      %503 = sbr.rel (0) target = $region45
    $region44: #{tpu_custom_call.1} parent=1 // pred_region
      %505 = dma.done [#allocation4], 128
    $region45: #{tpu_custom_call.1} parent=1 // pred_fallthru
      _
    // Predicated region
    $region46: #{tpu_custom_call.1} parent=1 // pred_check
      _
    $region47: #{tpu_custom_call.1} parent=1 // pred_check_branch
      %507 = sbr.rel (0) target = $region49
    $region48: #{tpu_custom_call.1} parent=1 // pred_region
      %509 = dma.done [#allocation9], 16
    $region49: #{tpu_custom_call.1} parent=1 // pred_fallthru
      _
    %510 = vsyncpa [#allocation3], 1
    %511 = vsyncpa [#allocation6], 1
    %512 = vsyncpa [#allocation4], 1
    %513 = vsyncpa [#allocation9], 1

</llo_original>
